<compile_context>
chip_gen: v7x
topology: tpu7x:2x2x1
jax: 0.10.0
libtpu: 0.0.40
codegen_flags: <defaults>
</compile_context>

<pallas_src>
import jax
import jax.numpy as jnp
from jax.experimental import pallas as pl
from jax.experimental.pallas import tpu as pltpu

# ---------------------------------------------------------------------------
# Packed parameter slab layout: f32 [_SLAB_ROWS, 32], segments 8-row aligned.
#   rows  0: 2  -> w1  (2, 32)
#   row   8     -> b1  (1, 32)
#   rows 16:48  -> w2  (32, 32)
#   row  48     -> b2  (1, 32)
#   rows 56:88  -> w3  (32, 32)  (only cols 0:2 non-zero)
#   row  88     -> b3  (1, 32)   (only cols 0:2 non-zero)
# ---------------------------------------------------------------------------
_IN, _H, _OUT = 2, 32, 2
_W1_R, _B1_R, _W2_R, _B2_R, _W3_R, _B3_R = 0, 8, 16, 48, 56, 88
_SLAB_ROWS = 96


def _two_layer_net_kernel(x_ref, p_ref, out_ref):
    x = x_ref[...]                                   # (B, 2) f32

    w1_r0 = p_ref[_W1_R:_W1_R + 1, :]                # (1, 32)
    w1_r1 = p_ref[_W1_R + 1:_W1_R + 2, :]            # (1, 32)
    b1 = p_ref[_B1_R:_B1_R + 1, :]                   # (1, 32)
    w2 = p_ref[_W2_R:_W2_R + _H, :]                  # (32, 32)
    b2 = p_ref[_B2_R:_B2_R + 1, :]                   # (1, 32)
    w3 = p_ref[_W3_R:_W3_R + _H, :]                  # (32, 32), cols 2: are zero
    b3 = p_ref[_B3_R:_B3_R + 1, :]                   # (1, 32), cols 2: are zero

    # Layer 1: Linear(2 -> 32) + ReLU, on the VPU (two broadcast FMAs — no MXU
    # push/pop for a K=2 matmul).
    h = jnp.maximum(x[:, 0:1] * w1_r0 + x[:, 1:2] * w1_r1 + b1, 0.0)
    # Layer 2: Linear(32 -> 32) + ReLU on the MXU.
    h = jnp.maximum(jnp.dot(h, w2, preferred_element_type=jnp.float32) + b2, 0.0)
    # Layer 3: Linear(32 -> 2) computed 32-wide on zero-padded weights, then sliced.
    u = jnp.dot(h, w3, preferred_element_type=jnp.float32) + b3     # (B, 32)
    out_ref[...] = u[:, :_OUT].astype(out_ref.dtype)                # (B, 2)


def pack_params(params):
    """Pack w1,b1,w2,b2,w3,b3 into one f32 [96, 32] slab (done once, off hot path).

    Weights MUST be [in_features, out_features] (i.e. PyTorch `.weight` transposed).
    The non-square layers are shape-asserted so a PyTorch-layout weight cannot
    slip through silently.
    """
    w1 = jnp.asarray(params["w1"], jnp.float32)
    w2 = jnp.asarray(params["w2"], jnp.float32)
    w3 = jnp.asarray(params["w3"], jnp.float32)
    assert w1.shape == (_IN, _H), f"w1 must be [in={_IN}, out={_H}] (transposed torch layout), got {w1.shape}"
    assert w2.shape == (_H, _H), f"w2 must be [{_H}, {_H}], got {w2.shape}"
    assert w3.shape == (_H, _OUT), f"w3 must be [in={_H}, out={_OUT}] (transposed torch layout), got {w3.shape}"

    slab = jnp.zeros((_SLAB_ROWS, _H), jnp.float32)
    slab = slab.at[_W1_R:_W1_R + _IN, :].set(w1)
    slab = slab.at[_B1_R, :].set(jnp.asarray(params["b1"], jnp.float32).reshape(_H))
    slab = slab.at[_W2_R:_W2_R + _H, :].set(w2)
    slab = slab.at[_B2_R, :].set(jnp.asarray(params["b2"], jnp.float32).reshape(_H))
    slab = slab.at[_W3_R:_W3_R + _H, :_OUT].set(w3)
    slab = slab.at[_B3_R, :_OUT].set(jnp.asarray(params["b3"], jnp.float32).reshape(_OUT))
    return slab


def _cost_estimate(batch):
    # 2*B*(2*32 + 32*32 + 32*32) MACs-as-flops; slab + x in + u out bytes.
    return pl.CostEstimate(
        flops=2 * batch * (_IN * _H + _H * _H + _H * _H),
        transcendentals=0,
        bytes_accessed=4 * (_SLAB_ROWS * _H + batch * _IN + batch * _OUT),
    )


def two_layer_net_forward(x, packed_params, *, block_b=512):
    """x: (B, 2) f32, packed_params: (96, 32) f32 slab from pack_params().

    Small B: one grid-less call (optimal — launch bound).
    Large B (multiple of block_b, >= 2 tiles): 1-D batch grid, slab constant per
    step, dimension_semantics=("parallel",) so v7x's two TensorCores split it.
    """
    B = x.shape[0]

    if B >= 2 * block_b and B % block_b == 0:
        grid = (B // block_b,)
        return pl.pallas_call(
            _two_layer_net_kernel,
            out_shape=jax.ShapeDtypeStruct((B, _OUT), x.dtype),
            grid_spec=pltpu.PrefetchScalarGridSpec(
                num_scalar_prefetch=0,
                grid=grid,
                in_specs=[
                    pl.BlockSpec((block_b, _IN), lambda i: (i, 0)),        # x tile
                    pl.BlockSpec((_SLAB_ROWS, _H), lambda i: (0, 0)),      # slab (resident)
                ],
                out_specs=pl.BlockSpec((block_b, _OUT), lambda i: (i, 0)),
            ),
            compiler_params=pltpu.CompilerParams(
                dimension_semantics=("parallel",)),
            cost_estimate=_cost_estimate(B),
        )(x, packed_params)

    # Grid-less path: single step, 2 input DMAs, whole problem in VMEM.
    return pl.pallas_call(
        _two_layer_net_kernel,
        out_shape=jax.ShapeDtypeStruct((B, _OUT), x.dtype),
        in_specs=[pl.BlockSpec(memory_space=pltpu.VMEM),   # x
                  pl.BlockSpec(memory_space=pltpu.VMEM)],  # packed parameter slab
        out_specs=pl.BlockSpec(memory_space=pltpu.VMEM),
        cost_estimate=_cost_estimate(B),
    )(x, packed_params)


def init_params(key):
    """Mimics torch.nn.Linear init U(-1/sqrt(fan_in), 1/sqrt(fan_in)); weights [in, out]."""
    def linear(key, fan_in, fan_out):
        kw, kb = jax.random.split(key)
        bound = 1.0 / jnp.sqrt(jnp.float32(fan_in))
        w = jax.random.uniform(kw, (fan_in, fan_out), jnp.float32, -bound, bound)
        b = jax.random.uniform(kb, (1, fan_out), jnp.float32, -bound, bound)
        return w, b

    k1, k2, k3 = jax.random.split(key, 3)
    w1, b1 = linear(k1, _IN, _H)
    w2, b2 = linear(k2, _H, _H)
    w3, b3 = linear(k3, _H, _OUT)
    return {"w1": w1, "b1": b1, "w2": w2, "b2": b2, "w3": w3, "b3": b3}


def _reference_forward(x, p):
    h = jnp.maximum(x @ p["w1"] + p["b1"], 0.0)
    h = jnp.maximum(h @ p["w2"] + p["b2"], 0.0)
    return h @ p["w3"] + p["b3"]


if __name__ == "__main__":
    key = jax.random.PRNGKey(0)
    kx, kb, kp = jax.random.split(key, 3)

    params = init_params(kp)
    slab = jax.block_until_ready(pack_params(params))     # packed once, off hot path

    # --- Small-batch (grid-less) path -------------------------------------
    batch = 8                                              # multiple of 8 (f32 sublanes)
    x = jax.random.normal(kx, (batch, _IN), jnp.float32)   # control-state input (B, 2)
    u = jax.block_until_ready(two_layer_net_forward(x, slab))
    u_ref = _reference_forward(x, params)
    assert u.shape == (batch, _OUT)
    assert jnp.allclose(u, u_ref, atol=1e-5, rtol=1e-5), "small-batch mismatch vs reference"

    # --- Large-batch (batch-grid, megacore-parallel) path ------------------
    big_batch = 1024
    xb = jax.random.normal(kb, (big_batch, _IN), jnp.float32)
    ub = jax.block_until_ready(two_layer_net_forward(xb, slab, block_b=512))
    ub_ref = _reference_forward(xb, params)
    assert ub.shape == (big_batch, _OUT)
    assert jnp.allclose(ub, ub_ref, atol=1e-5, rtol=1e-5), "large-batch mismatch vs reference"

    print("KERNEL_OK")
</pallas_src>

<mosaic_0001>
module attributes {stable_mosaic.version = 11 : i64} {
  func.func @_two_layer_net_kernel(%arg0: memref<8x2xf32, #tpu.memory_space<vmem>>, %arg1: memref<96x32xf32, #tpu.memory_space<vmem>>, %arg2: memref<8x2xf32, #tpu.memory_space<vmem>>) attributes {dimension_semantics = [], scalar_prefetch = 0 : i64, scratch_operands = 0 : i64, tpu.core_type = #tpu.core_type<tc>} {
    %c0 = arith.constant 0 : index
    %c0_0 = arith.constant 0 : index
    %0 = vector.load %arg0[%c0, %c0_0] : memref<8x2xf32, #tpu.memory_space<vmem>>, vector<8x2xf32>
    %c0_1 = arith.constant 0 : index
    %c0_2 = arith.constant 0 : index
    %1 = vector.load %arg1[%c0_1, %c0_2] : memref<96x32xf32, #tpu.memory_space<vmem>>, vector<1x32xf32>
    %c1 = arith.constant 1 : index
    %c0_3 = arith.constant 0 : index
    %2 = vector.load %arg1[%c1, %c0_3] : memref<96x32xf32, #tpu.memory_space<vmem>>, vector<1x32xf32>
    %c8 = arith.constant 8 : index
    %c0_4 = arith.constant 0 : index
    %3 = vector.load %arg1[%c8, %c0_4] : memref<96x32xf32, #tpu.memory_space<vmem>>, vector<1x32xf32>
    %c16 = arith.constant 16 : index
    %c0_5 = arith.constant 0 : index
    %4 = vector.load %arg1[%c16, %c0_5] : memref<96x32xf32, #tpu.memory_space<vmem>>, vector<32x32xf32>
    %c48 = arith.constant 48 : index
    %c0_6 = arith.constant 0 : index
    %5 = vector.load %arg1[%c48, %c0_6] : memref<96x32xf32, #tpu.memory_space<vmem>>, vector<1x32xf32>
    %c56 = arith.constant 56 : index
    %c0_7 = arith.constant 0 : index
    %6 = vector.load %arg1[%c56, %c0_7] : memref<96x32xf32, #tpu.memory_space<vmem>>, vector<32x32xf32>
    %c88 = arith.constant 88 : index
    %c0_8 = arith.constant 0 : index
    %7 = vector.load %arg1[%c88, %c0_8] : memref<96x32xf32, #tpu.memory_space<vmem>>, vector<1x32xf32>
    %8 = vector.extract_strided_slice %0 {offsets = [0, 0], sizes = [8, 1], strides = [1, 1]} : vector<8x2xf32> to vector<8x1xf32>
    %9 = vector.broadcast %8 : vector<8x1xf32> to vector<8x32xf32>
    %10 = vector.broadcast %1 : vector<1x32xf32> to vector<8x32xf32>
    %11 = arith.mulf %9, %10 : vector<8x32xf32>
    %12 = vector.extract_strided_slice %0 {offsets = [0, 1], sizes = [8, 1], strides = [1, 1]} : vector<8x2xf32> to vector<8x1xf32>
    %13 = vector.broadcast %12 : vector<8x1xf32> to vector<8x32xf32>
    %14 = vector.broadcast %2 : vector<1x32xf32> to vector<8x32xf32>
    %15 = arith.mulf %13, %14 : vector<8x32xf32>
    %16 = arith.addf %11, %15 : vector<8x32xf32>
    %17 = vector.broadcast %3 : vector<1x32xf32> to vector<8x32xf32>
    %18 = arith.addf %16, %17 : vector<8x32xf32>
    %cst = arith.constant 0.000000e+00 : f32
    %19 = vector.broadcast %cst : f32 to vector<8x32xf32>
    %20 = arith.maximumf %18, %19 : vector<8x32xf32>
    %cst_9 = arith.constant dense<0.000000e+00> : vector<8x32xf32>
    %21 = tpu.matmul %20, %4, %cst_9 {dimension_numbers = #tpu.dot_dimension_numbers<[1], [0], [0], [1], [0, 0, 1, 1], [], []>} : vector<8x32xf32>, vector<32x32xf32>, vector<8x32xf32> -> vector<8x32xf32>
    %22 = vector.broadcast %5 : vector<1x32xf32> to vector<8x32xf32>
    %23 = arith.addf %21, %22 : vector<8x32xf32>
    %cst_10 = arith.constant 0.000000e+00 : f32
    %24 = vector.broadcast %cst_10 : f32 to vector<8x32xf32>
    %25 = arith.maximumf %23, %24 : vector<8x32xf32>
    %cst_11 = arith.constant dense<0.000000e+00> : vector<8x32xf32>
    %26 = tpu.matmul %25, %6, %cst_11 {dimension_numbers = #tpu.dot_dimension_numbers<[1], [0], [0], [1], [0, 0, 1, 1], [], []>} : vector<8x32xf32>, vector<32x32xf32>, vector<8x32xf32> -> vector<8x32xf32>
    %27 = vector.broadcast %7 : vector<1x32xf32> to vector<8x32xf32>
    %28 = arith.addf %26, %27 : vector<8x32xf32>
    %29 = vector.extract_strided_slice %28 {offsets = [0, 0], sizes = [8, 2], strides = [1, 1]} : vector<8x32xf32> to vector<8x2xf32>
    %c0_12 = arith.constant 0 : index
    %c0_13 = arith.constant 0 : index
    %30 = vector.load %arg2[%c0_12, %c0_13] : memref<8x2xf32, #tpu.memory_space<vmem>>, vector<8x2xf32>
    tpu.vector_store %arg2[%c0_12, %c0_13], %29 {strides = array<i32>} : memref<8x2xf32, #tpu.memory_space<vmem>>, vector<8x2xf32>,
    return
  }
}

</mosaic_0001>

<llo_original>
// kernel: tpu_custom_call.1
$region0: #{tpu_custom_call.1}
  #allocation0 [shape = 'u32[]', space=smem, size = 0x4, offset = 0x4, fixed_abs, tag = 'smem constant byte address 0x4 - core index']
  #allocation1 [shape = 'u32[144,128]{1,0:T(1,128)}', space=vmem, size = 0x12000, scoped, tag = 'internal scratch']
  %s0 = inlined_call_operand.vmem [shape: f32[8,2], index: 0, kind: input, shape index: {}]
  %s1 = inlined_call_operand.vmem [shape: f32[96,32], index: 1, kind: input, shape index: {}]
  %s2 = inlined_call_operand.vmem [shape: f32[8,2], index: 2, kind: output, shape index: {}]
  %s3 = sld [smem:[#allocation0]]
  $region18: #{tpu_custom_call.1} parent=0
    _
  %s5 = ssub.s32 1, %s3
  %s6 = scalar_select 0, %s5, %s3
  // Predicated region
  $region2: #{tpu_custom_call.1} parent=0 // pred_check
    _
  $region3: #{tpu_custom_call.1} parent=0 // pred_check_branch
    %8 = sbr.rel (0) target = $region5
  $region4: #{tpu_custom_call.1} parent=0 // pred_region
    _
  $region5: #{tpu_custom_call.1} parent=0 // pred_fallthru
    _
  // Predicated region
  $region6: #{tpu_custom_call.1} parent=0 // pred_check
    _
  $region7: #{tpu_custom_call.1} parent=0 // pred_check_branch
    %10 = sbr.rel (0) target = $region9
  $region8: #{tpu_custom_call.1} parent=0 // pred_region
    _
  $region9: #{tpu_custom_call.1} parent=0 // pred_fallthru
    _
  %v11 = vld [vmem:[%s0] sm:$0xff]
  %v12 = vld [vmem:[%s1] sm:$0x1]
  %v13 = vld [vmem:[%s1 + $0x1] sm:$0x1]
  %v14 = vld [vmem:[%s1 + $0x8] sm:$0x1]
  %v15 = vld [vmem:[%s1 + $0x10] sm:$0xff]
  %v16 = vld [vmem:[%s1 + $0x18] sm:$0xff]
  %v17 = vld [vmem:[%s1 + $0x20] sm:$0xff]
  %v18 = vld [vmem:[%s1 + $0x28] sm:$0xff]
  %v19 = vld [vmem:[%s1 + $0x30] sm:$0x1]
  %v20 = vld [vmem:[%s1 + $0x38] sm:$0xff]
  %v21 = vld [vmem:[%s1 + $0x40] sm:$0xff]
  %v22 = vld [vmem:[%s1 + $0x48] sm:$0xff]
  %v23 = vld [vmem:[%s1 + $0x50] sm:$0xff]
  %v24 = vld [vmem:[%s1 + $0x58] sm:$0x1]
  %26 = vset.pattern.permute.xlu0 0
  %27 = vperm.xlu0 %26, %v11
  %v28 = vpop.permute.xlu0 %27
  %v30 = vlaneseq
  %v31 = vshrl.u32 %v30, 7
  %v32 = vsub.s32 0, %v31
  %v33 = vrot.slane %v12, %v32
  %v34 = vmul.f32 %v28, %v33
  %35 = vset.pattern.permute.xlu0 1
  %36 = vperm.xlu0 %35, %v11
  %v37 = vpop.permute.xlu0 %36
  %v39 = vlaneseq
  %v40 = vshrl.u32 %v39, 7
  %v41 = vsub.s32 0, %v40
  %v42 = vrot.slane %v13, %v41
  %v43 = vmul.f32 %v37, %v42
  %v44 = vadd.f32 %v34, %v43
  %v45 = vlaneseq
  %v46 = vshrl.u32 %v45, 7
  %v47 = vsub.s32 0, %v46
  %v48 = vrot.slane %v14, %v47
  %v49 = vadd.f32 %v44, %v48
  %v50 = vmax.f32 %v49, 0.0
  %v51 = vlaneseq
  %v52 = vshrl.u32 %v51, 7
  %v53 = vsub.s32 0, %v52
  %v54 = vrot.slane %v19, %v53
  %vm55 = vcmask 261120
  %v57 = vsel %vm55, %v50, 0
  %59 = vmatprep.subr.mxu0 0.0
  %60 = vmatpush1.msra.mxu0 %v15
  %61 = vmatprep.subr.mxu0 0.0
  %62 = vmatpush1.msra.mxu0 %v16
  %63 = vmatprep.subr.mxu0 0.0
  %64 = vmatpush1.msra.mxu0 %v17
  %65 = vmatprep.subr.mxu0 0.0
  %66 = vmatpush1.msra.mxu0 %v18
  %67 = vmatprep.subr.mxu0 0.0
  %68 = vmatpush1.msra.mxu0 0.0
  %69 = vmatprep.subr.mxu0 0.0
  %70 = vmatpush1.msra.mxu0 0.0
  %71 = vmatprep.subr.mxu0 0.0
  %72 = vmatpush1.msra.mxu0 0.0
  %73 = vmatprep.subr.mxu0 0.0
  %74 = vmatpush1.msra.mxu0 0.0
  %75 = vmatprep.subr.mxu0 0.0
  %76 = vmatpush1.msra.mxu0 0.0
  %77 = vmatprep.subr.mxu0 0.0
  %78 = vmatpush1.msra.mxu0 0.0
  %79 = vmatprep.subr.mxu0 0.0
  %80 = vmatpush1.msra.mxu0 0.0
  %81 = vmatprep.subr.mxu0 0.0
  %82 = vmatpush1.msra.mxu0 0.0
  %83 = vmatprep.subr.mxu0 0.0
  %84 = vmatpush1.msra.mxu0 0.0
  %85 = vmatprep.subr.mxu0 0.0
  %86 = vmatpush1.msra.mxu0 0.0
  %87 = vmatprep.subr.mxu0 0.0
  %88 = vmatpush1.msra.mxu0 0.0
  %89 = vmatprep.subr.mxu0 0.0
  %90 = vmatpush1.msra.mxu0 0.0
  %91 = vmatprep.subr.mxu0 0.0
  %92 = vmatpush1.msra.mxu0 0.0
  %93 = vmatprep.subr.mxu0 0.0
  %94 = vmatpush1.msra.mxu0 0.0
  %95 = vmatprep.subr.mxu0 0.0
  %96 = vmatpush1.msra.mxu0 0.0
  %97 = vmatprep.subr.mxu0 0.0
  %98 = vmatpush1.msra.mxu0 0.0
  %99 = vmatprep.subr.mxu0 0.0
  %100 = vmatpush1.msra.mxu0 0.0
  %101 = vmatprep.subr.mxu0 0.0
  %102 = vmatpush1.msra.mxu0 0.0
  %103 = vmatprep.subr.mxu0 0.0
  %104 = vmatpush1.msra.mxu0 0.0
  %105 = vmatprep.subr.mxu0 0.0
  %106 = vmatpush1.msra.mxu0 0.0
  %107 = vmatprep.subr.mxu0 0.0
  %108 = vmatpush1.msra.mxu0 0.0
  %109 = vmatprep.subr.mxu0 0.0
  %110 = vmatpush1.msra.mxu0 0.0
  %111 = vmatprep.subr.mxu0 0.0
  %112 = vmatpush1.msra.mxu0 0.0
  %113 = vmatprep.subr.mxu0 0.0
  %114 = vmatpush1.msra.mxu0 0.0
  %115 = vmatprep.subr.mxu0 0.0
  %116 = vmatpush1.msra.mxu0 0.0
  %117 = vmatprep.subr.mxu0 0.0
  %118 = vmatpush1.msra.mxu0 0.0
  %119 = vmatprep.subr.mxu0 0.0
  %120 = vmatpush1.msra.mxu0 0.0
  %121 = vmatprep.subr.mxu0 0.0
  %122 = vmatpush1.msra.mxu0 0.0
  %123 = vmatprep.mubr.f32.mxu0 0.0
  %124 = vmatmul.mubr.f32.gmra.mrb[0].mxu0 %v57
  %v125 = vpop.f32.mrb[0].mxu0
  %v126 = vadd.f32 %v54, %v125
  %v127 = vpop.f32.mrb[0].mxu0
  %128 = vdwg.mxu0
  %v129 = vmax.f32 %v126, 0.0
  %v130 = vlaneseq
  %v131 = vshrl.u32 %v130, 7
  %v132 = vsub.s32 0, %v131
  %v133 = vrot.slane %v24, %v132
  %v135 = vsel %vm55, %v129, 0
  %137 = vmatprep.subr.mxu0 0.0
  %138 = vmatpush1.msra.mxu0 %v20
  %139 = vmatprep.subr.mxu0 0.0
  %140 = vmatpush1.msra.mxu0 %v21
  %141 = vmatprep.subr.mxu0 0.0
  %142 = vmatpush1.msra.mxu0 %v22
  %143 = vmatprep.subr.mxu0 0.0
  %144 = vmatpush1.msra.mxu0 %v23
  %145 = vmatprep.subr.mxu0 0.0
  %146 = vmatpush1.msra.mxu0 0.0
  %147 = vmatprep.subr.mxu0 0.0
  %148 = vmatpush1.msra.mxu0 0.0
  %149 = vmatprep.subr.mxu0 0.0
  %150 = vmatpush1.msra.mxu0 0.0
  %151 = vmatprep.subr.mxu0 0.0
  %152 = vmatpush1.msra.mxu0 0.0
  %153 = vmatprep.subr.mxu0 0.0
  %154 = vmatpush1.msra.mxu0 0.0
  %155 = vmatprep.subr.mxu0 0.0
  %156 = vmatpush1.msra.mxu0 0.0
  %157 = vmatprep.subr.mxu0 0.0
  %158 = vmatpush1.msra.mxu0 0.0
  %159 = vmatprep.subr.mxu0 0.0
  %160 = vmatpush1.msra.mxu0 0.0
  %161 = vmatprep.subr.mxu0 0.0
  %162 = vmatpush1.msra.mxu0 0.0
  %163 = vmatprep.subr.mxu0 0.0
  %164 = vmatpush1.msra.mxu0 0.0
  %165 = vmatprep.subr.mxu0 0.0
  %166 = vmatpush1.msra.mxu0 0.0
  %167 = vmatprep.subr.mxu0 0.0
  %168 = vmatpush1.msra.mxu0 0.0
  %169 = vmatprep.subr.mxu0 0.0
  %170 = vmatpush1.msra.mxu0 0.0
  %171 = vmatprep.subr.mxu0 0.0
  %172 = vmatpush1.msra.mxu0 0.0
  %173 = vmatprep.subr.mxu0 0.0
  %174 = vmatpush1.msra.mxu0 0.0
  %175 = vmatprep.subr.mxu0 0.0
  %176 = vmatpush1.msra.mxu0 0.0
  %177 = vmatprep.subr.mxu0 0.0
  %178 = vmatpush1.msra.mxu0 0.0
  %179 = vmatprep.subr.mxu0 0.0
  %180 = vmatpush1.msra.mxu0 0.0
  %181 = vmatprep.subr.mxu0 0.0
  %182 = vmatpush1.msra.mxu0 0.0
  %183 = vmatprep.subr.mxu0 0.0
  %184 = vmatpush1.msra.mxu0 0.0
  %185 = vmatprep.subr.mxu0 0.0
  %186 = vmatpush1.msra.mxu0 0.0
  %187 = vmatprep.subr.mxu0 0.0
  %188 = vmatpush1.msra.mxu0 0.0
  %189 = vmatprep.subr.mxu0 0.0
  %190 = vmatpush1.msra.mxu0 0.0
  %191 = vmatprep.subr.mxu0 0.0
  %192 = vmatpush1.msra.mxu0 0.0
  %193 = vmatprep.subr.mxu0 0.0
  %194 = vmatpush1.msra.mxu0 0.0
  %195 = vmatprep.subr.mxu0 0.0
  %196 = vmatpush1.msra.mxu0 0.0
  %197 = vmatprep.subr.mxu0 0.0
  %198 = vmatpush1.msra.mxu0 0.0
  %199 = vmatprep.subr.mxu0 0.0
  %200 = vmatpush1.msra.mxu0 0.0
  %201 = vmatprep.mubr.f32.mxu0 0.0
  %202 = vmatmul.mubr.f32.gmra.mrb[0].mxu0 %v135
  %v203 = vpop.f32.mrb[0].mxu0
  %v204 = vadd.f32 %v133, %v203
  %v205 = vpop.f32.mrb[0].mxu0
  %206 = vdwg.mxu0
  %vm207 = vcmask 15360
  %208 = vst.msk [vmem:[%s2] sm:$0xff] %vm207, %v204
  // Predicated region
  $region10: #{tpu_custom_call.1} parent=0 // pred_check
    _
  $region11: #{tpu_custom_call.1} parent=0 // pred_check_branch
    %210 = sbr.rel (0) target = $region13
  $region12: #{tpu_custom_call.1} parent=0 // pred_region
    _
  $region13: #{tpu_custom_call.1} parent=0 // pred_fallthru
    _
  // Predicated region
  $region14: #{tpu_custom_call.1} parent=0 // pred_check
    _
  $region15: #{tpu_custom_call.1} parent=0 // pred_check_branch
    %212 = sbr.rel (0) target = $region17
  $region16: #{tpu_custom_call.1} parent=0 // pred_region
    _
  $region17: #{tpu_custom_call.1} parent=0 // pred_fallthru
    _

</llo_original>
